<compile_context>
chip_gen: v7x
topology: tpu7x:2x2x1
jax: 0.10.0
libtpu: 0.0.40
codegen_flags: <defaults>
</compile_context>

<pallas_src>
import math

import jax
import jax.numpy as jnp
from jax.experimental import pallas as pl
from jax.experimental.pallas import tpu as pltpu

H1, H2, H3 = 256, 128, 64
LANE = 128


def _round_up(x, m):
    return ((x + m - 1) // m) * m


def _default_bf16_epilogue():
    """bf16 VPU exists on v6e / v7x; keep the f32 epilogue elsewhere (v5e & older, CPU)."""
    try:
        kind = jax.devices()[0].device_kind.lower()
    except Exception:
        return False
    return any(tag in kind for tag in ("v6", "v7", "7x"))


def _choose_tiling(B, tm_max=1024):
    """Pick (tm, b_pad, n_steps): balanced tiles, 16-row aligned, >=2 (even) steps when possible."""
    n = max(1, -(-B // tm_max))
    if B >= 32:                      # enough rows for two fully-packed bf16 tiles
        n = max(n, 2)                # keep both v7x TensorCores busy
        if n % 2:
            n += 1                   # even step count shards evenly across 2 TCs
    tm = _round_up(-(-B // n), 16)   # 16-row alignment: bf16 packs 2 rows per sublane
    return tm, tm * n, n


def make_dqn_kernel(bf16_epilogue):
    def act(acc_f32, b_ref):
        if bf16_epilogue:
            # One f32->bf16 cast of the accumulator, then bf16 bias-add + ReLU
            # (halves VALU vreg traffic / live vregs between layers).
            return jnp.maximum(acc_f32.astype(jnp.bfloat16) + b_ref[...].astype(jnp.bfloat16),
                               jnp.bfloat16(0.0))
        # f32 bias-add + ReLU (v5e has no bf16 VPU), then cast for the next matmul.
        return jnp.maximum(acc_f32 + b_ref[...], 0.0).astype(jnp.bfloat16)

    def dqn_kernel(x_ref, w1_ref, b1_ref, w2_ref, b2_ref, w3_ref, b3_ref,
                   w4_ref, b4_ref, o_ref):
        # In-kernel f32 -> bf16 cast of the x tile (avoids a separate XLA cast pass
        # that would round-trip a bf16 copy of x through HBM).
        x = x_ref[...].astype(jnp.bfloat16)
        # Layer 1..3 + ReLU: bf16 inputs -> f32 MXU accumulate -> epilogue -> bf16.
        h = act(jnp.dot(x, w1_ref[...], preferred_element_type=jnp.float32), b1_ref)
        h = act(jnp.dot(h, w2_ref[...], preferred_element_type=jnp.float32), b2_ref)
        h = act(jnp.dot(h, w3_ref[...], preferred_element_type=jnp.float32), b3_ref)
        # Layer 4, no activation (out-dim zero-padded to 128 lanes), bf16 store.
        o = jnp.dot(h, w4_ref[...], preferred_element_type=jnp.float32) + b4_ref[...]
        o_ref[...] = o.astype(o_ref.dtype)

    return dqn_kernel


def prepare_params(params):
    """Cast weights to bf16, keep biases f32, zero-pad layer-3/4 out-dims to 128 lanes."""
    w3, w4 = params["w3"], params["w4"]
    n_actions = w4.shape[1]
    h3_pad = _round_up(w3.shape[1], LANE)
    na_pad = _round_up(n_actions, LANE)

    w3p = jnp.zeros((w3.shape[0], h3_pad), jnp.float32).at[:, :w3.shape[1]].set(w3)
    w4p = jnp.zeros((h3_pad, na_pad), jnp.float32).at[:w4.shape[0], :n_actions].set(w4)
    b3p = jnp.zeros((1, h3_pad), jnp.float32).at[:, :w3.shape[1]].set(params["b3"])
    b4p = jnp.zeros((1, na_pad), jnp.float32).at[:, :n_actions].set(params["b4"])

    return dict(
        w1=params["w1"].astype(jnp.bfloat16), b1=params["b1"].astype(jnp.float32),
        w2=params["w2"].astype(jnp.bfloat16), b2=params["b2"].astype(jnp.float32),
        w3=w3p.astype(jnp.bfloat16), b3=b3p,
        w4=w4p.astype(jnp.bfloat16), b4=b4p,
    )


def dqn_forward(x, p, n_actions, *, tm_max=1024, bf16_epilogue=None, return_padded=False):
    """x: (B, n_observations) f32. p: prepared (bf16/padded) params.

    Returns (B, n_actions) f32 by default, or the padded (b_pad, 128) bf16 buffer
    when return_padded=True (saves the follow-on slice for callers that can use it).
    """
    if bf16_epilogue is None:
        bf16_epilogue = _default_bf16_epilogue()

    B, n_obs = x.shape
    na_pad = p["w4"].shape[1]
    h3_pad = p["w3"].shape[1]

    tm, b_pad, n_steps = _choose_tiling(B, tm_max)

    # Zero-pad the batch to the tile boundary (f32; no dtype cast here — that happens
    # inside the kernel). Padded rows never mix with real rows and are sliced off.
    x_in = x if b_pad == B else jnp.pad(x, ((0, b_pad - B), (0, 0)))

    grid = (n_steps,)

    def resident(shape):
        # Same block index every grid step -> weights/biases stay resident in VMEM.
        return pl.BlockSpec(shape, lambda i: (0, 0))

    in_specs = [
        pl.BlockSpec((tm, n_obs), lambda i: (i, 0)),   # x tile, pipelined over batch
        resident(p["w1"].shape), resident(p["b1"].shape),
        resident(p["w2"].shape), resident(p["b2"].shape),
        resident(p["w3"].shape), resident(p["b3"].shape),
        resident(p["w4"].shape), resident(p["b4"].shape),
    ]
    out_specs = pl.BlockSpec((tm, na_pad), lambda i: (i, 0))

    flops = 2 * b_pad * (n_obs * H1 + H1 * H2 + H2 * h3_pad + h3_pad * na_pad)
    param_bytes = sum(int(p[k].size) * p[k].dtype.itemsize
                      for k in ("w1", "b1", "w2", "b2", "w3", "b3", "w4", "b4"))
    bytes_accessed = int(x_in.size) * 4 + b_pad * na_pad * 2 + param_bytes

    out = pl.pallas_call(
        make_dqn_kernel(bf16_epilogue),
        out_shape=jax.ShapeDtypeStruct((b_pad, na_pad), jnp.bfloat16),
        grid=grid,
        in_specs=in_specs,
        out_specs=out_specs,
        compiler_params=pltpu.CompilerParams(
            dimension_semantics=("parallel",)),
        cost_estimate=pl.CostEstimate(
            flops=flops, transcendentals=0, bytes_accessed=bytes_accessed),
    )(x_in, p["w1"], p["b1"], p["w2"], p["b2"], p["w3"], p["b3"], p["w4"], p["b4"])

    if return_padded:
        return out
    # Tiny (B, n_actions) slice + cast back to f32 for PyTorch-module parity.
    return out[:B, :n_actions].astype(jnp.float32)


def init_linear(key, fan_in, fan_out):
    """PyTorch nn.Linear default init: U(-1/sqrt(fan_in), 1/sqrt(fan_in))."""
    kw, kb = jax.random.split(key)
    bound = 1.0 / math.sqrt(fan_in)
    w = jax.random.uniform(kw, (fan_in, fan_out), jnp.float32, -bound, bound)
    b = jax.random.uniform(kb, (1, fan_out), jnp.float32, -bound, bound)
    return w, b


def init_dqn_params(key, n_observations, n_actions):
    k1, k2, k3, k4 = jax.random.split(key, 4)
    w1, b1 = init_linear(k1, n_observations, H1)
    w2, b2 = init_linear(k2, H1, H2)
    w3, b3 = init_linear(k3, H2, H3)
    w4, b4 = init_linear(k4, H3, n_actions)
    return dict(w1=w1, b1=b1, w2=w2, b2=b2, w3=w3, b3=b3, w4=w4, b4=b4)


def dqn_reference_kernel_path(x, p, n_actions, bf16_epilogue):
    """Pure-JAX reference mirroring the kernel's exact numeric path."""
    def act(acc, b):
        if bf16_epilogue:
            return jnp.maximum(acc.astype(jnp.bfloat16) + b.astype(jnp.bfloat16),
                               jnp.bfloat16(0.0))
        return jnp.maximum(acc + b, 0.0).astype(jnp.bfloat16)

    h = x.astype(jnp.bfloat16)
    h = act(jnp.dot(h, p["w1"], preferred_element_type=jnp.float32), p["b1"])
    h = act(jnp.dot(h, p["w2"], preferred_element_type=jnp.float32), p["b2"])
    h = act(jnp.dot(h, p["w3"], preferred_element_type=jnp.float32), p["b3"])
    o = jnp.dot(h, p["w4"], preferred_element_type=jnp.float32) + p["b4"]
    o = o.astype(jnp.bfloat16).astype(jnp.float32)   # kernel stores bf16
    return o[:, :n_actions]


def dqn_reference_f32(x, p):
    h = jnp.maximum(x @ p["w1"] + p["b1"], 0.0)
    h = jnp.maximum(h @ p["w2"] + p["b2"], 0.0)
    h = jnp.maximum(h @ p["w3"] + p["b3"], 0.0)
    return h @ p["w4"] + p["b4"]


if __name__ == "__main__":
    key = jax.random.PRNGKey(0)
    k_params, k_x1, k_x2 = jax.random.split(key, 3)

    n_observations = 16   # len(observation0) — synthetic choice
    n_actions = 4         # len(action_space)

    params = init_dqn_params(k_params, n_observations, n_actions)
    prepared = prepare_params(params)
    bf16_epi = _default_bf16_epilogue()

    # --- small batch (single-tile path) ---
    batch = 8
    x = jax.random.normal(k_x1, (batch, n_observations), jnp.float32)
    out = jax.block_until_ready(dqn_forward(x, prepared, n_actions))
    assert out.shape == (batch, n_actions)

    ref_k = dqn_reference_kernel_path(x, prepared, n_actions, bf16_epi)
    assert jnp.allclose(out, ref_k, atol=1e-2, rtol=1e-2), \
        float(jnp.max(jnp.abs(out - ref_k)))
    ref_f32 = dqn_reference_f32(x, params)
    assert jnp.allclose(out, ref_f32, atol=1e-1, rtol=1e-1), \
        float(jnp.max(jnp.abs(out - ref_f32)))

    # --- larger, non-divisible batch (multi-step grid + balanced-tile padding path) ---
    batch2 = 300
    x2 = jax.random.normal(k_x2, (batch2, n_observations), jnp.float32)
    out2 = jax.block_until_ready(dqn_forward(x2, prepared, n_actions))
    assert out2.shape == (batch2, n_actions)

    ref_k2 = dqn_reference_kernel_path(x2, prepared, n_actions, bf16_epi)
    assert jnp.allclose(out2, ref_k2, atol=1e-2, rtol=1e-2), \
        float(jnp.max(jnp.abs(out2 - ref_k2)))
    ref2_f32 = dqn_reference_f32(x2, params)
    assert jnp.allclose(out2, ref2_f32, atol=1e-1, rtol=1e-1), \
        float(jnp.max(jnp.abs(out2 - ref2_f32)))

    print("KERNEL_OK")
</pallas_src>

<mosaic_0001>
module attributes {stable_mosaic.version = 11 : i64} {
  func.func @dqn_kernel(%arg0: i32, %arg1: memref<16x16xf32, #tpu.memory_space<vmem>>, %arg2: memref<16x256xbf16, #tpu.memory_space<vmem>>, %arg3: memref<1x256xf32, #tpu.memory_space<vmem>>, %arg4: memref<256x128xbf16, #tpu.memory_space<vmem>>, %arg5: memref<1x128xf32, #tpu.memory_space<vmem>>, %arg6: memref<128x128xbf16, #tpu.memory_space<vmem>>, %arg7: memref<1x128xf32, #tpu.memory_space<vmem>>, %arg8: memref<128x128xbf16, #tpu.memory_space<vmem>>, %arg9: memref<1x128xf32, #tpu.memory_space<vmem>>, %arg10: memref<16x128xbf16, #tpu.memory_space<vmem>>) attributes {dimension_semantics = [#tpu.dimension_semantics<parallel>], iteration_bounds = array<i64: 1>, scalar_prefetch = 0 : i64, scratch_operands = 0 : i64, tpu.core_type = #tpu.core_type<tc>, window_params = [{transform_indices = @transform_0, window_bounds = array<i64: 16, 16>}, {pipeline_mode = #tpu.pipeline_mode<synchronous>, transform_indices = @transform_1, window_bounds = array<i64: 16, 256>}, {pipeline_mode = #tpu.pipeline_mode<synchronous>, transform_indices = @transform_2, window_bounds = array<i64: 1, 256>}, {pipeline_mode = #tpu.pipeline_mode<synchronous>, transform_indices = @transform_3, window_bounds = array<i64: 256, 128>}, {pipeline_mode = #tpu.pipeline_mode<synchronous>, transform_indices = @transform_4, window_bounds = array<i64: 1, 128>}, {pipeline_mode = #tpu.pipeline_mode<synchronous>, transform_indices = @transform_5, window_bounds = array<i64: 128, 128>}, {pipeline_mode = #tpu.pipeline_mode<synchronous>, transform_indices = @transform_6, window_bounds = array<i64: 1, 128>}, {pipeline_mode = #tpu.pipeline_mode<synchronous>, transform_indices = @transform_7, window_bounds = array<i64: 128, 128>}, {pipeline_mode = #tpu.pipeline_mode<synchronous>, transform_indices = @transform_8, window_bounds = array<i64: 1, 128>}, {transform_indices = @transform_9, window_bounds = array<i64: 16, 128>}]} {
    %c0 = arith.constant 0 : index
    %c0_0 = arith.constant 0 : index
    %0 = vector.load %arg1[%c0, %c0_0] : memref<16x16xf32, #tpu.memory_space<vmem>>, vector<16x16xf32>
    %1 = arith.truncf %0 : vector<16x16xf32> to vector<16x16xbf16>
    %c0_1 = arith.constant 0 : index
    %c0_2 = arith.constant 0 : index
    %2 = vector.load %arg2[%c0_1, %c0_2] : memref<16x256xbf16, #tpu.memory_space<vmem>>, vector<16x256xbf16>
    %cst = arith.constant dense<0.000000e+00> : vector<16x256xf32>
    %3 = tpu.matmul %1, %2, %cst {dimension_numbers = #tpu.dot_dimension_numbers<[1], [0], [0], [1], [0, 0, 1, 1], [], []>} : vector<16x16xbf16>, vector<16x256xbf16>, vector<16x256xf32> -> vector<16x256xf32>
    %c0_3 = arith.constant 0 : index
    %c0_4 = arith.constant 0 : index
    %4 = vector.load %arg3[%c0_3, %c0_4] : memref<1x256xf32, #tpu.memory_space<vmem>>, vector<1x256xf32>
    %5 = vector.broadcast %4 : vector<1x256xf32> to vector<16x256xf32>
    %6 = arith.addf %3, %5 : vector<16x256xf32>
    %cst_5 = arith.constant 0.000000e+00 : f32
    %7 = vector.broadcast %cst_5 : f32 to vector<16x256xf32>
    %8 = arith.maximumf %6, %7 : vector<16x256xf32>
    %9 = arith.truncf %8 : vector<16x256xf32> to vector<16x256xbf16>
    %c0_6 = arith.constant 0 : index
    %c0_7 = arith.constant 0 : index
    %10 = vector.load %arg4[%c0_6, %c0_7] : memref<256x128xbf16, #tpu.memory_space<vmem>>, vector<256x128xbf16>
    %cst_8 = arith.constant dense<0.000000e+00> : vector<16x128xf32>
    %11 = tpu.matmul %9, %10, %cst_8 {dimension_numbers = #tpu.dot_dimension_numbers<[1], [0], [0], [1], [0, 0, 1, 1], [], []>} : vector<16x256xbf16>, vector<256x128xbf16>, vector<16x128xf32> -> vector<16x128xf32>
    %c0_9 = arith.constant 0 : index
    %c0_10 = arith.constant 0 : index
    %12 = vector.load %arg5[%c0_9, %c0_10] : memref<1x128xf32, #tpu.memory_space<vmem>>, vector<1x128xf32>
    %13 = vector.broadcast %12 : vector<1x128xf32> to vector<16x128xf32>
    %14 = arith.addf %11, %13 : vector<16x128xf32>
    %cst_11 = arith.constant 0.000000e+00 : f32
    %15 = vector.broadcast %cst_11 : f32 to vector<16x128xf32>
    %16 = arith.maximumf %14, %15 : vector<16x128xf32>
    %17 = arith.truncf %16 : vector<16x128xf32> to vector<16x128xbf16>
    %c0_12 = arith.constant 0 : index
    %c0_13 = arith.constant 0 : index
    %18 = vector.load %arg6[%c0_12, %c0_13] : memref<128x128xbf16, #tpu.memory_space<vmem>>, vector<128x128xbf16>
    %cst_14 = arith.constant dense<0.000000e+00> : vector<16x128xf32>
    %19 = tpu.matmul %17, %18, %cst_14 {dimension_numbers = #tpu.dot_dimension_numbers<[1], [0], [0], [1], [0, 0, 1, 1], [], []>} : vector<16x128xbf16>, vector<128x128xbf16>, vector<16x128xf32> -> vector<16x128xf32>
    %c0_15 = arith.constant 0 : index
    %c0_16 = arith.constant 0 : index
    %20 = vector.load %arg7[%c0_15, %c0_16] : memref<1x128xf32, #tpu.memory_space<vmem>>, vector<1x128xf32>
    %21 = vector.broadcast %20 : vector<1x128xf32> to vector<16x128xf32>
    %22 = arith.addf %19, %21 : vector<16x128xf32>
    %cst_17 = arith.constant 0.000000e+00 : f32
    %23 = vector.broadcast %cst_17 : f32 to vector<16x128xf32>
    %24 = arith.maximumf %22, %23 : vector<16x128xf32>
    %25 = arith.truncf %24 : vector<16x128xf32> to vector<16x128xbf16>
    %c0_18 = arith.constant 0 : index
    %c0_19 = arith.constant 0 : index
    %26 = vector.load %arg8[%c0_18, %c0_19] : memref<128x128xbf16, #tpu.memory_space<vmem>>, vector<128x128xbf16>
    %cst_20 = arith.constant dense<0.000000e+00> : vector<16x128xf32>
    %27 = tpu.matmul %25, %26, %cst_20 {dimension_numbers = #tpu.dot_dimension_numbers<[1], [0], [0], [1], [0, 0, 1, 1], [], []>} : vector<16x128xbf16>, vector<128x128xbf16>, vector<16x128xf32> -> vector<16x128xf32>
    %c0_21 = arith.constant 0 : index
    %c0_22 = arith.constant 0 : index
    %28 = vector.load %arg9[%c0_21, %c0_22] : memref<1x128xf32, #tpu.memory_space<vmem>>, vector<1x128xf32>
    %29 = vector.broadcast %28 : vector<1x128xf32> to vector<16x128xf32>
    %30 = arith.addf %27, %29 : vector<16x128xf32>
    %31 = arith.truncf %30 : vector<16x128xf32> to vector<16x128xbf16>
    %c0_23 = arith.constant 0 : index
    %c0_24 = arith.constant 0 : index
    %32 = vector.load %arg10[%c0_23, %c0_24] : memref<16x128xbf16, #tpu.memory_space<vmem>>, vector<16x128xbf16>
    tpu.vector_store %arg10[%c0_23, %c0_24], %31 {strides = array<i32>} : memref<16x128xbf16, #tpu.memory_space<vmem>>, vector<16x128xbf16>,
    return
  }
  func.func @transform_0(%arg0: i32) -> (i32, i32) {
    %c0_i32 = arith.constant 0 : i32
    %c0_i32_0 = arith.constant 0 : i32
    return %arg0, %c0_i32 : i32, i32
  }
  func.func @transform_1(%arg0: i32) -> (i32, i32) {
    %c0_i32 = arith.constant 0 : i32
    %c0_i32_0 = arith.constant 0 : i32
    %c0_i32_1 = arith.constant 0 : i32
    return %c0_i32, %c0_i32_0 : i32, i32
  }
  func.func @transform_2(%arg0: i32) -> (i32, i32) {
    %c0_i32 = arith.constant 0 : i32
    %c0_i32_0 = arith.constant 0 : i32
    %c0_i32_1 = arith.constant 0 : i32
    return %c0_i32, %c0_i32_0 : i32, i32
  }
  func.func @transform_3(%arg0: i32) -> (i32, i32) {
    %c0_i32 = arith.constant 0 : i32
    %c0_i32_0 = arith.constant 0 : i32
    %c0_i32_1 = arith.constant 0 : i32
    return %c0_i32, %c0_i32_0 : i32, i32
  }
  func.func @transform_4(%arg0: i32) -> (i32, i32) {
    %c0_i32 = arith.constant 0 : i32
    %c0_i32_0 = arith.constant 0 : i32
    %c0_i32_1 = arith.constant 0 : i32
    return %c0_i32, %c0_i32_0 : i32, i32
  }
  func.func @transform_5(%arg0: i32) -> (i32, i32) {
    %c0_i32 = arith.constant 0 : i32
    %c0_i32_0 = arith.constant 0 : i32
    %c0_i32_1 = arith.constant 0 : i32
    return %c0_i32, %c0_i32_0 : i32, i32
  }
  func.func @transform_6(%arg0: i32) -> (i32, i32) {
    %c0_i32 = arith.constant 0 : i32
    %c0_i32_0 = arith.constant 0 : i32
    %c0_i32_1 = arith.constant 0 : i32
    return %c0_i32, %c0_i32_0 : i32, i32
  }
  func.func @transform_7(%arg0: i32) -> (i32, i32) {
    %c0_i32 = arith.constant 0 : i32
    %c0_i32_0 = arith.constant 0 : i32
    %c0_i32_1 = arith.constant 0 : i32
    return %c0_i32, %c0_i32_0 : i32, i32
  }
  func.func @transform_8(%arg0: i32) -> (i32, i32) {
    %c0_i32 = arith.constant 0 : i32
    %c0_i32_0 = arith.constant 0 : i32
    %c0_i32_1 = arith.constant 0 : i32
    return %c0_i32, %c0_i32_0 : i32, i32
  }
  func.func @transform_9(%arg0: i32) -> (i32, i32) {
    %c0_i32 = arith.constant 0 : i32
    %c0_i32_0 = arith.constant 0 : i32
    return %arg0, %c0_i32 : i32, i32
  }
}

</mosaic_0001>

<llo_original>
// kernel: tpu_custom_call.1
$region0: #{tpu_custom_call.1}
  #allocation0 [shape = 'u32[]', space=smem, size = 0x4, offset = 0x4, fixed_abs, tag = 'smem constant byte address 0x4 - core index']
  #allocation1 [shape = 'u32[144,128]{1,0:T(1,128)}', space=vmem, size = 0x12000, scoped, tag = 'internal scratch']
  %s0 = inlined_call_operand.hbm [shape: f32[16,16], index: 0, kind: input, shape index: {}]
  %s1 = inlined_call_operand.hbm [shape: bf16[16,256], index: 1, kind: input, shape index: {}]
  %s2 = inlined_call_operand.vmem [shape: f32[1,256], index: 2, kind: input, shape index: {}]
  %s3 = inlined_call_operand.hbm [shape: bf16[256,128], index: 3, kind: input, shape index: {}]
  %s4 = inlined_call_operand.vmem [shape: f32[1,128], index: 4, kind: input, shape index: {}]
  %s5 = inlined_call_operand.hbm [shape: bf16[128,128], index: 5, kind: input, shape index: {}]
  %s6 = inlined_call_operand.vmem [shape: f32[1,128], index: 6, kind: input, shape index: {}]
  %s7 = inlined_call_operand.hbm [shape: bf16[128,128], index: 7, kind: input, shape index: {}]
  %s8 = inlined_call_operand.vmem [shape: f32[1,128], index: 8, kind: input, shape index: {}]
  %s9 = inlined_call_operand.hbm [shape: bf16[16,128], index: 9, kind: output, shape index: {}]
  %s10 = sld [smem:[#allocation0]]
  $region66: #{tpu_custom_call.1} parent=0
    _
  %s12 = ssub.s32 1, %s10
  %s13 = scalar_select 0, %s12, %s10
  $region1: #{tpu_custom_call.1} parent=0
    #allocation2 [shape = 'u8[8192]{0}', space=vmem, size = 0x2000, scoped, tag = 'input window, operand 0, single buffered']
    #allocation3 [shape = 's32[1]{0}', space=sflag, size = 0x4, scoped, tag = 'scoped memory for tpu_custom_call.1']
    #allocation4 [shape = 's32[1]{0}', space=sflag, size = 0x4, scoped, tag = 'scoped memory for tpu_custom_call.1']
    #allocation5 [shape = 'u8[8192]{0}', space=vmem, size = 0x2000, scoped, tag = 'input window, operand 1, single buffered']
    #allocation6 [shape = 's32[1]{0}', space=sflag, size = 0x4, scoped, tag = 'scoped memory for tpu_custom_call.1']
    #allocation7 [shape = 'u8[65536]{0}', space=vmem, size = 0x10000, scoped, tag = 'input window, operand 3, single buffered']
    #allocation8 [shape = 'u8[32768]{0}', space=vmem, size = 0x8000, scoped, tag = 'input window, operand 5, single buffered']
    #allocation9 [shape = 's32[1]{0}', space=sflag, size = 0x4, scoped, tag = 'scoped memory for tpu_custom_call.1']
    #allocation10 [shape = 'u8[32768]{0}', space=vmem, size = 0x8000, scoped, tag = 'input window, operand 7, single buffered']
    #allocation11 [shape = 'u8[4096]{0}', space=vmem, size = 0x1000, scoped, tag = 'output window, operand 0, single buffered']
    %14 = vsyncpa [#allocation3], 0
    %15 = vsyncpa [#allocation6], 0
    %16 = vsyncpa [#allocation9], 0
    %17 = vsyncpa [#allocation4], 0
    // Predicated region
    $region2: #{tpu_custom_call.1} parent=1 // pred_check
      _
    $region3: #{tpu_custom_call.1} parent=1 // pred_check_branch
      %19 = sbr.rel (0) target = $region5
    $region4: #{tpu_custom_call.1} parent=1 // pred_region
      %s21 = ssub.s32 256, 256
      %22 = vsyncadd [#allocation3], %s21
      %s23 = sshll.u32 [#allocation2], 4
      %s24 = int_to_ptr.vmem [resolvable:$true] %s23
      %29 = dma.hbm_to_vmem [thread:$0]  %s0, 256, %s24, [#allocation3], 128, 128, 8
    $region5: #{tpu_custom_call.1} parent=1 // pred_fallthru
      _
    // Predicated region
    $region6: #{tpu_custom_call.1} parent=1 // pred_check
      _
    $region7: #{tpu_custom_call.1} parent=1 // pred_check_branch
      %31 = sbr.rel (0) target = $region9
    $region8: #{tpu_custom_call.1} parent=1 // pred_region
      %s33 = ssub.s32 256, 256
      %34 = vsyncadd [#allocation6], %s33
      %s35 = sshll.u32 [#allocation5], 4
      %s36 = int_to_ptr.vmem [resolvable:$true] %s35
      %41 = dma.hbm_to_vmem [thread:$0]  %s1, 256, %s36, [#allocation6], 128, 128, 8
    $region9: #{tpu_custom_call.1} parent=1 // pred_fallthru
      _
    // Predicated region
    $region10: #{tpu_custom_call.1} parent=1 // pred_check
      _
    $region11: #{tpu_custom_call.1} parent=1 // pred_check_branch
      %43 = sbr.rel (0) target = $region13
    $region12: #{tpu_custom_call.1} parent=1 // pred_region
      _
    $region13: #{tpu_custom_call.1} parent=1 // pred_fallthru
      _
    // Predicated region
    $region14: #{tpu_custom_call.1} parent=1 // pred_check
      _
    $region15: #{tpu_custom_call.1} parent=1 // pred_check_branch
      %45 = sbr.rel (0) target = $region17
    $region16: #{tpu_custom_call.1} parent=1 // pred_region
      %s47 = ssub.s32 2048, 2048
      %48 = vsyncadd [#allocation6], %s47
      %s49 = sshll.u32 [#allocation7], 4
      %s50 = int_to_ptr.vmem [resolvable:$true] %s49
      %55 = dma.hbm_to_vmem [thread:$0]  %s3, 2048, %s50, [#allocation6], 64, 64, 4
    $region17: #{tpu_custom_call.1} parent=1 // pred_fallthru
      _
    // Predicated region
    $region18: #{tpu_custom_call.1} parent=1 // pred_check
      _
    $region19: #{tpu_custom_call.1} parent=1 // pred_check_branch
      %57 = sbr.rel (0) target = $region21
    $region20: #{tpu_custom_call.1} parent=1 // pred_region
      _
    $region21: #{tpu_custom_call.1} parent=1 // pred_fallthru
      _
    // Predicated region
    $region22: #{tpu_custom_call.1} parent=1 // pred_check
      _
    $region23: #{tpu_custom_call.1} parent=1 // pred_check_branch
      %59 = sbr.rel (0) target = $region25
    $region24: #{tpu_custom_call.1} parent=1 // pred_region
      %s61 = ssub.s32 1024, 1024
      %62 = vsyncadd [#allocation9], %s61
      %s63 = sshll.u32 [#allocation8], 4
      %s64 = int_to_ptr.vmem [resolvable:$true] %s63
      %69 = dma.hbm_to_vmem [thread:$0]  %s5, 1024, %s64, [#allocation9], 64, 64, 4
    $region25: #{tpu_custom_call.1} parent=1 // pred_fallthru
      _
    // Predicated region
    $region26: #{tpu_custom_call.1} parent=1 // pred_check
      _
    $region27: #{tpu_custom_call.1} parent=1 // pred_check_branch
      %71 = sbr.rel (0) target = $region29
    $region28: #{tpu_custom_call.1} parent=1 // pred_region
      _
    $region29: #{tpu_custom_call.1} parent=1 // pred_fallthru
      _
    // Predicated region
    $region30: #{tpu_custom_call.1} parent=1 // pred_check
      _
    $region31: #{tpu_custom_call.1} parent=1 // pred_check_branch
      %73 = sbr.rel (0) target = $region33
    $region32: #{tpu_custom_call.1} parent=1 // pred_region
      %s75 = ssub.s32 1024, 1024
      %76 = vsyncadd [#allocation9], %s75
      %s77 = sshll.u32 [#allocation10], 4
      %s78 = int_to_ptr.vmem [resolvable:$true] %s77
      %83 = dma.hbm_to_vmem [thread:$0]  %s7, 1024, %s78, [#allocation9], 64, 64, 4
    $region33: #{tpu_custom_call.1} parent=1 // pred_fallthru
      _
    // Predicated region
    $region34: #{tpu_custom_call.1} parent=1 // pred_check
      _
    $region35: #{tpu_custom_call.1} parent=1 // pred_check_branch
      %85 = sbr.rel (0) target = $region37
    $region36: #{tpu_custom_call.1} parent=1 // pred_region
      _
    $region37: #{tpu_custom_call.1} parent=1 // pred_fallthru
      _
    // Predicated region
    $region38: #{tpu_custom_call.1} parent=1 // pred_check
      _
    $region39: #{tpu_custom_call.1} parent=1 // pred_check_branch
      %87 = sbr.rel (0) target = $region41
    $region40: #{tpu_custom_call.1} parent=1 // pred_region
      %88 = dma.done [#allocation3], 256
    $region41: #{tpu_custom_call.1} parent=1 // pred_fallthru
      _
    // Predicated region
    $region42: #{tpu_custom_call.1} parent=1 // pred_check
      _
    $region43: #{tpu_custom_call.1} parent=1 // pred_check_branch
      %90 = sbr.rel (0) target = $region45
    $region44: #{tpu_custom_call.1} parent=1 // pred_region
      %91 = dma.done [#allocation6], 256
    $region45: #{tpu_custom_call.1} parent=1 // pred_fallthru
      _
    // Predicated region
    $region46: #{tpu_custom_call.1} parent=1 // pred_check
      _
    $region47: #{tpu_custom_call.1} parent=1 // pred_check_branch
      %93 = sbr.rel (0) target = $region49
    $region48: #{tpu_custom_call.1} parent=1 // pred_region
      %94 = dma.done [#allocation6], 2048
    $region49: #{tpu_custom_call.1} parent=1 // pred_fallthru
      _
    // Predicated region
    $region50: #{tpu_custom_call.1} parent=1 // pred_check
      _
    $region51: #{tpu_custom_call.1} parent=1 // pred_check_branch
      %96 = sbr.rel (0) target = $region53
    $region52: #{tpu_custom_call.1} parent=1 // pred_region
      %97 = dma.done [#allocation9], 1024
    $region53: #{tpu_custom_call.1} parent=1 // pred_fallthru
      _
    // Predicated region
    $region54: #{tpu_custom_call.1} parent=1 // pred_check
      _
    $region55: #{tpu_custom_call.1} parent=1 // pred_check_branch
      %99 = sbr.rel (0) target = $region57
    $region56: #{tpu_custom_call.1} parent=1 // pred_region
      %100 = dma.done [#allocation9], 1024
    $region57: #{tpu_custom_call.1} parent=1 // pred_fallthru
      _
    %v102 = vld [vmem:[#allocation2] sm:$0xff]
    %v103 = vld [vmem:[#allocation2 + $0x8] sm:$0xff]
    %v104 = vpack.c.bf16 %v103, %v102
    %v105 = vld [vmem:[#allocation5] sm:$0xff]
    %v106 = vld [vmem:[#allocation5 + $0x8] sm:$0xff]
    %v107 = vld [vmem:[%s2] sm:$0x3]
    %v109 = vlaneseq
    %v110 = vshrl.u32 %v109, 7
    %v111 = vsub.s32 0, %v110
    %v112 = vrot.slane %v107, %v111
    %v113 = vlaneseq
    %v114 = vshrl.u32 %v113, 7
    %v115 = vsub.s32 1, %v114
    %v116 = vrot.slane %v107, %v115
    %v121 = vunpack.c.l.b16 %v105
    %v122 = vunpack.c.h.b16 %v105
    %v123 = vunpack.c.l.b16 %v106
    %v124 = vunpack.c.h.b16 %v106
    %v125 = vpack.c.b16 %v123, %v121
    %v126 = vpack.c.b16 %v124, %v122
    %vm129 = vcmask 130048
    %v131 = vsel %vm129, %v104, 0
    %133 = vmatprep.subr.bf16.mxu0 %v126
    %134 = vmatpush1.bf16.msra.mxu0 %v125
    %135 = vmatprep.subr.bf16.mxu0 0
    %136 = vmatpush1.bf16.msra.mxu0 0
    %137 = vmatprep.subr.bf16.mxu0 0
    %138 = vmatpush1.bf16.msra.mxu0 0
    %139 = vmatprep.subr.bf16.mxu0 0
    %140 = vmatpush1.bf16.msra.mxu0 0
    %141 = vmatprep.subr.bf16.mxu0 0
    %142 = vmatpush1.bf16.msra.mxu0 0
    %143 = vmatprep.subr.bf16.mxu0 0
    %144 = vmatpush1.bf16.msra.mxu0 0
    %145 = vmatprep.subr.bf16.mxu0 0
    %146 = vmatpush1.bf16.msra.mxu0 0
    %147 = vmatprep.subr.bf16.mxu0 0
    %148 = vmatpush1.bf16.msra.mxu0 0
    %149 = vmatprep.subr.bf16.mxu0 0
    %150 = vmatpush1.bf16.msra.mxu0 0
    %151 = vmatprep.subr.bf16.mxu0 0
    %152 = vmatpush1.bf16.msra.mxu0 0
    %153 = vmatprep.subr.bf16.mxu0 0
    %154 = vmatpush1.bf16.msra.mxu0 0
    %155 = vmatprep.subr.bf16.mxu0 0
    %156 = vmatpush1.bf16.msra.mxu0 0
    %157 = vmatprep.subr.bf16.mxu0 0
    %158 = vmatpush1.bf16.msra.mxu0 0
    %159 = vmatprep.subr.bf16.mxu0 0
    %160 = vmatpush1.bf16.msra.mxu0 0
    %161 = vmatprep.subr.bf16.mxu0 0
    %162 = vmatpush1.bf16.msra.mxu0 0
    %163 = vmatprep.subr.bf16.mxu0 0
    %164 = vmatpush1.bf16.msra.mxu0 0
    %165 = vmatprep.mubr.bf16.mxu0 0
    %166 = vmatmul.mubr.bf16.gmra.mrb[0].mxu0 %v131
    %v167 = vpop.f32.mrb[0].mxu0
    %v168 = vadd.f32 %v112, %v167
    %v169 = vpop.f32.mrb[0].mxu0
    %v170 = vadd.f32 %v116, %v169
    %v171 = vpop.f32.mrb[0].mxu0
    %v172 = vadd.f32 %v112, %v171
    %v173 = vpop.f32.mrb[0].mxu0
    %v174 = vadd.f32 %v116, %v173
    %175 = vdwg.mxu0
    %v176 = vmax.f32 %v168, 0.0
    %v177 = vmax.f32 %v170, 0.0
    %v178 = vmax.f32 %v172, 0.0
    %v179 = vmax.f32 %v174, 0.0
    %v180 = vpack.c.bf16 %v178, %v176
    %v181 = vpack.c.bf16 %v179, %v177
    %v182 = vld [vmem:[#allocation7] sm:$0xf]
    %v183 = vld [vmem:[#allocation7 + $0x4] sm:$0xf]
    %v184 = vld [vmem:[#allocation7 + $0x8] sm:$0xf]
    %v185 = vld [vmem:[#allocation7 + $0xc] sm:$0xf]
    %v186 = vld [vmem:[#allocation7 + $0x10] sm:$0xf]
    %v187 = vld [vmem:[#allocation7 + $0x14] sm:$0xf]
    %v188 = vld [vmem:[#allocation7 + $0x18] sm:$0xf]
    %v189 = vld [vmem:[#allocation7 + $0x1c] sm:$0xf]
    %v190 = vld [vmem:[#allocation7 + $0x20] sm:$0xf]
    %v191 = vld [vmem:[#allocation7 + $0x24] sm:$0xf]
    %v192 = vld [vmem:[#allocation7 + $0x28] sm:$0xf]
    %v193 = vld [vmem:[#allocation7 + $0x2c] sm:$0xf]
    %v194 = vld [vmem:[#allocation7 + $0x30] sm:$0xf]
    %v195 = vld [vmem:[#allocation7 + $0x34] sm:$0xf]
    %v196 = vld [vmem:[#allocation7 + $0x38] sm:$0xf]
    %v197 = vld [vmem:[#allocation7 + $0x3c] sm:$0xf]
    %v198 = vld [vmem:[#allocation7 + $0x40] sm:$0xf]
    %v199 = vld [vmem:[#allocation7 + $0x44] sm:$0xf]
    %v200 = vld [vmem:[#allocation7 + $0x48] sm:$0xf]
    %v201 = vld [vmem:[#allocation7 + $0x4c] sm:$0xf]
    %v202 = vld [vmem:[#allocation7 + $0x50] sm:$0xf]
    %v203 = vld [vmem:[#allocation7 + $0x54] sm:$0xf]
    %v204 = vld [vmem:[#allocation7 + $0x58] sm:$0xf]
    %v205 = vld [vmem:[#allocation7 + $0x5c] sm:$0xf]
    %v206 = vld [vmem:[#allocation7 + $0x60] sm:$0xf]
    %v207 = vld [vmem:[#allocation7 + $0x64] sm:$0xf]
    %v208 = vld [vmem:[#allocation7 + $0x68] sm:$0xf]
    %v209 = vld [vmem:[#allocation7 + $0x6c] sm:$0xf]
    %v210 = vld [vmem:[#allocation7 + $0x70] sm:$0xf]
    %v211 = vld [vmem:[#allocation7 + $0x74] sm:$0xf]
    %v212 = vld [vmem:[#allocation7 + $0x78] sm:$0xf]
    %v213 = vld [vmem:[#allocation7 + $0x7c] sm:$0xf]
    %v214 = vld [vmem:[%s4] sm:$0x1]
    %v216 = vlaneseq
    %v217 = vshrl.u32 %v216, 7
    %v218 = vsub.s32 0, %v217
    %v219 = vrot.slane %v214, %v218
    %v253 = vunpack.c.l.b16 %v182
    %v254 = vunpack.c.l.b16 %v183
    %v255 = vunpack.c.l.b16 %v184
    %v256 = vunpack.c.l.b16 %v185
    %v257 = vunpack.c.l.b16 %v186
    %v258 = vunpack.c.l.b16 %v187
    %v259 = vunpack.c.l.b16 %v188
    %v260 = vunpack.c.l.b16 %v189
    %v261 = vunpack.c.l.b16 %v190
    %v262 = vunpack.c.l.b16 %v191
    %v263 = vunpack.c.l.b16 %v192
    %v264 = vunpack.c.l.b16 %v193
    %v265 = vunpack.c.l.b16 %v194
    %v266 = vunpack.c.l.b16 %v195
    %v267 = vunpack.c.l.b16 %v196
    %v268 = vunpack.c.l.b16 %v197
    %v269 = vunpack.c.l.b16 %v198
    %v270 = vunpack.c.l.b16 %v199
    %v271 = vunpack.c.l.b16 %v200
    %v272 = vunpack.c.l.b16 %v201
    %v273 = vunpack.c.l.b16 %v202
    %v274 = vunpack.c.l.b16 %v203
    %v275 = vunpack.c.l.b16 %v204
    %v276 = vunpack.c.l.b16 %v205
    %v277 = vunpack.c.l.b16 %v206
    %v278 = vunpack.c.l.b16 %v207
    %v279 = vunpack.c.l.b16 %v208
    %v280 = vunpack.c.l.b16 %v209
    %v281 = vunpack.c.l.b16 %v210
    %v282 = vunpack.c.l.b16 %v211
    %v283 = vunpack.c.l.b16 %v212
    %v284 = vunpack.c.l.b16 %v213
    %v285 = vpack.c.b16 %v254, %v253
    %v286 = vpack.c.b16 %v256, %v255
    %v287 = vpack.c.b16 %v258, %v257
    %v288 = vpack.c.b16 %v260, %v259
    %v289 = vpack.c.b16 %v262, %v261
    %v290 = vpack.c.b16 %v264, %v263
    %v291 = vpack.c.b16 %v266, %v265
    %v292 = vpack.c.b16 %v268, %v267
    %v293 = vpack.c.b16 %v270, %v269
    %v294 = vpack.c.b16 %v272, %v271
    %v295 = vpack.c.b16 %v274, %v273
    %v296 = vpack.c.b16 %v276, %v275
    %v297 = vpack.c.b16 %v278, %v277
    %v298 = vpack.c.b16 %v280, %v279
    %v299 = vpack.c.b16 %v282, %v281
    %v300 = vpack.c.b16 %v284, %v283
    %317 = vmatprep.subr.bf16.mxu0 0
    %318 = vmatpush1.bf16.msra.mxu0 %v285
    %319 = vmatprep.subr.bf16.mxu0 0
    %320 = vmatpush1.bf16.msra.mxu0 %v286
    %321 = vmatprep.subr.bf16.mxu0 0
    %322 = vmatpush1.bf16.msra.mxu0 %v287
    %323 = vmatprep.subr.bf16.mxu0 0
    %324 = vmatpush1.bf16.msra.mxu0 %v288
    %325 = vmatprep.subr.bf16.mxu0 0
    %326 = vmatpush1.bf16.msra.mxu0 %v289
    %327 = vmatprep.subr.bf16.mxu0 0
    %328 = vmatpush1.bf16.msra.mxu0 %v290
    %329 = vmatprep.subr.bf16.mxu0 0
    %330 = vmatpush1.bf16.msra.mxu0 %v291
    %331 = vmatprep.subr.bf16.mxu0 0
    %332 = vmatpush1.bf16.msra.mxu0 %v292
    %333 = vmatprep.subr.bf16.mxu0 0
    %334 = vmatpush1.bf16.msra.mxu0 %v293
    %335 = vmatprep.subr.bf16.mxu0 0
    %336 = vmatpush1.bf16.msra.mxu0 %v294
    %337 = vmatprep.subr.bf16.mxu0 0
    %338 = vmatpush1.bf16.msra.mxu0 %v295
    %339 = vmatprep.subr.bf16.mxu0 0
    %340 = vmatpush1.bf16.msra.mxu0 %v296
    %341 = vmatprep.subr.bf16.mxu0 0
    %342 = vmatpush1.bf16.msra.mxu0 %v297
    %343 = vmatprep.subr.bf16.mxu0 0
    %344 = vmatpush1.bf16.msra.mxu0 %v298
    %345 = vmatprep.subr.bf16.mxu0 0
    %346 = vmatpush1.bf16.msra.mxu0 %v299
    %347 = vmatprep.subr.bf16.mxu0 0
    %348 = vmatpush1.bf16.msra.mxu0 %v300
    %349 = vmatprep.mubr.bf16.mxu0 %v181
    %350 = vmatmul.mubr.bf16.gmra.mrb[0].mxu0 %v180
    %v351 = vpop.f32.mrb[0].mxu0
    %v352 = vadd.f32 %v219, %v351
    %v353 = vpop.f32.mrb[0].mxu0
    %v354 = vpop.f32.mrb[0].mxu0
    %v355 = vadd.f32 %v219, %v354
    %v356 = vpop.f32.mrb[0].mxu0
    %357 = vdwg.mxu0
    %v358 = vmax.f32 %v352, 0.0
    %v359 = vmax.f32 %v355, 0.0
    %v360 = vpack.c.bf16 %v359, %v358
    %v361 = vld [vmem:[#allocation8] sm:$0xf]
    %v362 = vld [vmem:[#allocation8 + $0x4] sm:$0xf]
    %v363 = vld [vmem:[#allocation8 + $0x8] sm:$0xf]
    %v364 = vld [vmem:[#allocation8 + $0xc] sm:$0xf]
    %v365 = vld [vmem:[#allocation8 + $0x10] sm:$0xf]
    %v366 = vld [vmem:[#allocation8 + $0x14] sm:$0xf]
    %v367 = vld [vmem:[#allocation8 + $0x18] sm:$0xf]
    %v368 = vld [vmem:[#allocation8 + $0x1c] sm:$0xf]
    %v369 = vld [vmem:[#allocation8 + $0x20] sm:$0xf]
    %v370 = vld [vmem:[#allocation8 + $0x24] sm:$0xf]
    %v371 = vld [vmem:[#allocation8 + $0x28] sm:$0xf]
    %v372 = vld [vmem:[#allocation8 + $0x2c] sm:$0xf]
    %v373 = vld [vmem:[#allocation8 + $0x30] sm:$0xf]
    %v374 = vld [vmem:[#allocation8 + $0x34] sm:$0xf]
    %v375 = vld [vmem:[#allocation8 + $0x38] sm:$0xf]
    %v376 = vld [vmem:[#allocation8 + $0x3c] sm:$0xf]
    %v377 = vld [vmem:[%s6] sm:$0x1]
    %v379 = vlaneseq
    %v380 = vshrl.u32 %v379, 7
    %v381 = vsub.s32 0, %v380
    %v382 = vrot.slane %v377, %v381
    %v400 = vunpack.c.l.b16 %v361
    %v401 = vunpack.c.l.b16 %v362
    %v402 = vunpack.c.l.b16 %v363
    %v403 = vunpack.c.l.b16 %v364
    %v404 = vunpack.c.l.b16 %v365
    %v405 = vunpack.c.l.b16 %v366
    %v406 = vunpack.c.l.b16 %v367
    %v407 = vunpack.c.l.b16 %v368
    %v408 = vunpack.c.l.b16 %v369
    %v409 = vunpack.c.l.b16 %v370
    %v410 = vunpack.c.l.b16 %v371
    %v411 = vunpack.c.l.b16 %v372
    %v412 = vunpack.c.l.b16 %v373
    %v413 = vunpack.c.l.b16 %v374
    %v414 = vunpack.c.l.b16 %v375
    %v415 = vunpack.c.l.b16 %v376
    %v416 = vpack.c.b16 %v401, %v400
    %v417 = vpack.c.b16 %v403, %v402
    %v418 = vpack.c.b16 %v405, %v404
    %v419 = vpack.c.b16 %v407, %v406
    %v420 = vpack.c.b16 %v409, %v408
    %v421 = vpack.c.b16 %v411, %v410
    %v422 = vpack.c.b16 %v413, %v412
    %v423 = vpack.c.b16 %v415, %v414
    %432 = vmatprep.subr.bf16.mxu0 0
    %433 = vmatpush1.bf16.msra.mxu0 %v416
    %434 = vmatprep.subr.bf16.mxu0 0
    %435 = vmatpush1.bf16.msra.mxu0 %v417
    %436 = vmatprep.subr.bf16.mxu0 0
    %437 = vmatpush1.bf16.msra.mxu0 %v418
    %438 = vmatprep.subr.bf16.mxu0 0
    %439 = vmatpush1.bf16.msra.mxu0 %v419
    %440 = vmatprep.subr.bf16.mxu0 0
    %441 = vmatpush1.bf16.msra.mxu0 %v420
    %442 = vmatprep.subr.bf16.mxu0 0
    %443 = vmatpush1.bf16.msra.mxu0 %v421
    %444 = vmatprep.subr.bf16.mxu0 0
    %445 = vmatpush1.bf16.msra.mxu0 %v422
    %446 = vmatprep.subr.bf16.mxu0 0
    %447 = vmatpush1.bf16.msra.mxu0 %v423
    %448 = vmatprep.subr.bf16.mxu0 0
    %449 = vmatpush1.bf16.msra.mxu0 0
    %450 = vmatprep.subr.bf16.mxu0 0
    %451 = vmatpush1.bf16.msra.mxu0 0
    %452 = vmatprep.subr.bf16.mxu0 0
    %453 = vmatpush1.bf16.msra.mxu0 0
    %454 = vmatprep.subr.bf16.mxu0 0
    %455 = vmatpush1.bf16.msra.mxu0 0
    %456 = vmatprep.subr.bf16.mxu0 0
    %457 = vmatpush1.bf16.msra.mxu0 0
    %458 = vmatprep.subr.bf16.mxu0 0
    %459 = vmatpush1.bf16.msra.mxu0 0
    %460 = vmatprep.subr.bf16.mxu0 0
    %461 = vmatpush1.bf16.msra.mxu0 0
    %462 = vmatprep.subr.bf16.mxu0 0
    %463 = vmatpush1.bf16.msra.mxu0 0
    %464 = vmatprep.mubr.bf16.mxu0 0
    %465 = vmatmul.mubr.bf16.gmra.mrb[0].mxu0 %v360
    %v466 = vpop.f32.mrb[0].mxu0
    %v467 = vadd.f32 %v382, %v466
    %v468 = vpop.f32.mrb[0].mxu0
    %v469 = vpop.f32.mrb[0].mxu0
    %v470 = vadd.f32 %v382, %v469
    %v471 = vpop.f32.mrb[0].mxu0
    %472 = vdwg.mxu0
    %v473 = vmax.f32 %v467, 0.0
    %v474 = vmax.f32 %v470, 0.0
    %v475 = vpack.c.bf16 %v474, %v473
    %v476 = vld [vmem:[#allocation10] sm:$0xf]
    %v477 = vld [vmem:[#allocation10 + $0x4] sm:$0xf]
    %v478 = vld [vmem:[#allocation10 + $0x8] sm:$0xf]
    %v479 = vld [vmem:[#allocation10 + $0xc] sm:$0xf]
    %v480 = vld [vmem:[#allocation10 + $0x10] sm:$0xf]
    %v481 = vld [vmem:[#allocation10 + $0x14] sm:$0xf]
    %v482 = vld [vmem:[#allocation10 + $0x18] sm:$0xf]
    %v483 = vld [vmem:[#allocation10 + $0x1c] sm:$0xf]
    %v484 = vld [vmem:[#allocation10 + $0x20] sm:$0xf]
    %v485 = vld [vmem:[#allocation10 + $0x24] sm:$0xf]
    %v486 = vld [vmem:[#allocation10 + $0x28] sm:$0xf]
    %v487 = vld [vmem:[#allocation10 + $0x2c] sm:$0xf]
    %v488 = vld [vmem:[#allocation10 + $0x30] sm:$0xf]
    %v489 = vld [vmem:[#allocation10 + $0x34] sm:$0xf]
    %v490 = vld [vmem:[#allocation10 + $0x38] sm:$0xf]
    %v491 = vld [vmem:[#allocation10 + $0x3c] sm:$0xf]
    %v492 = vld [vmem:[%s8] sm:$0x1]
    %v494 = vlaneseq
    %v495 = vshrl.u32 %v494, 7
    %v496 = vsub.s32 0, %v495
    %v497 = vrot.slane %v492, %v496
    %v515 = vunpack.c.l.b16 %v476
    %v516 = vunpack.c.l.b16 %v477
    %v517 = vunpack.c.l.b16 %v478
    %v518 = vunpack.c.l.b16 %v479
    %v519 = vunpack.c.l.b16 %v480
    %v520 = vunpack.c.l.b16 %v481
    %v521 = vunpack.c.l.b16 %v482
    %v522 = vunpack.c.l.b16 %v483
    %v523 = vunpack.c.l.b16 %v484
    %v524 = vunpack.c.l.b16 %v485
    %v525 = vunpack.c.l.b16 %v486
    %v526 = vunpack.c.l.b16 %v487
    %v527 = vunpack.c.l.b16 %v488
    %v528 = vunpack.c.l.b16 %v489
    %v529 = vunpack.c.l.b16 %v490
    %v530 = vunpack.c.l.b16 %v491
    %v531 = vpack.c.b16 %v516, %v515
    %v532 = vpack.c.b16 %v518, %v517
    %v533 = vpack.c.b16 %v520, %v519
    %v534 = vpack.c.b16 %v522, %v521
    %v535 = vpack.c.b16 %v524, %v523
    %v536 = vpack.c.b16 %v526, %v525
    %v537 = vpack.c.b16 %v528, %v527
    %v538 = vpack.c.b16 %v530, %v529
    %547 = vmatprep.subr.bf16.mxu0 0
    %548 = vmatpush1.bf16.msra.mxu0 %v531
    %549 = vmatprep.subr.bf16.mxu0 0
    %550 = vmatpush1.bf16.msra.mxu0 %v532
    %551 = vmatprep.subr.bf16.mxu0 0
    %552 = vmatpush1.bf16.msra.mxu0 %v533
    %553 = vmatprep.subr.bf16.mxu0 0
    %554 = vmatpush1.bf16.msra.mxu0 %v534
    %555 = vmatprep.subr.bf16.mxu0 0
    %556 = vmatpush1.bf16.msra.mxu0 %v535
    %557 = vmatprep.subr.bf16.mxu0 0
    %558 = vmatpush1.bf16.msra.mxu0 %v536
    %559 = vmatprep.subr.bf16.mxu0 0
    %560 = vmatpush1.bf16.msra.mxu0 %v537
    %561 = vmatprep.subr.bf16.mxu0 0
    %562 = vmatpush1.bf16.msra.mxu0 %v538
    %563 = vmatprep.subr.bf16.mxu0 0
    %564 = vmatpush1.bf16.msra.mxu0 0
    %565 = vmatprep.subr.bf16.mxu0 0
    %566 = vmatpush1.bf16.msra.mxu0 0
    %567 = vmatprep.subr.bf16.mxu0 0
    %568 = vmatpush1.bf16.msra.mxu0 0
    %569 = vmatprep.subr.bf16.mxu0 0
    %570 = vmatpush1.bf16.msra.mxu0 0
    %571 = vmatprep.subr.bf16.mxu0 0
    %572 = vmatpush1.bf16.msra.mxu0 0
    %573 = vmatprep.subr.bf16.mxu0 0
    %574 = vmatpush1.bf16.msra.mxu0 0
    %575 = vmatprep.subr.bf16.mxu0 0
    %576 = vmatpush1.bf16.msra.mxu0 0
    %577 = vmatprep.subr.bf16.mxu0 0
    %578 = vmatpush1.bf16.msra.mxu0 0
    %579 = vmatprep.mubr.bf16.mxu0 0
    %580 = vmatmul.mubr.bf16.gmra.mrb[0].mxu0 %v475
    %v581 = vpop.f32.mrb[0].mxu0
    %v582 = vadd.f32 %v497, %v581
    %v583 = vpop.f32.mrb[0].mxu0
    %v584 = vpop.f32.mrb[0].mxu0
    %v585 = vadd.f32 %v497, %v584
    %v586 = vpop.f32.mrb[0].mxu0
    %587 = vdwg.mxu0
    %v588 = vpack.c.bf16 %v585, %v582
    %v590 = vunpack.c.l.b16 %v588
    %v591 = vunpack.c.h.b16 %v588
    %v592 = vpack.c.b16 %v590, %v590
    %v593 = vpack.c.b16 %v591, %v591
    %596 = vst [vmem:[#allocation11] sm:$0xf] %v592
    %597 = vst [vmem:[#allocation11 + $0x4] sm:$0xf] %v593
    // Predicated region
    $region58: #{tpu_custom_call.1} parent=1 // pred_check
      _
    $region59: #{tpu_custom_call.1} parent=1 // pred_check_branch
      %599 = sbr.rel (0) target = $region61
    $region60: #{tpu_custom_call.1} parent=1 // pred_region
      %s601 = ssub.s32 128, 128
      %602 = vsyncadd [#allocation4], %s601
      %s603 = sshll.u32 [#allocation11], 4
      %s604 = int_to_ptr.vmem [resolvable:$true] %s603
      %609 = dma.vmem_to_hbm [thread:$0]  %s604, 128, %s9, [#allocation4], 64, 64, 4
    $region61: #{tpu_custom_call.1} parent=1 // pred_fallthru
      _
    // Predicated region
    $region62: #{tpu_custom_call.1} parent=1 // pred_check
      _
    $region63: #{tpu_custom_call.1} parent=1 // pred_check_branch
      %611 = sbr.rel (0) target = $region65
    $region64: #{tpu_custom_call.1} parent=1 // pred_region
      %612 = dma.done [#allocation4], 128
    $region65: #{tpu_custom_call.1} parent=1 // pred_fallthru
      _
    %613 = vsyncpa [#allocation3], 1
    %614 = vsyncpa [#allocation6], 1
    %615 = vsyncpa [#allocation9], 1
    %616 = vsyncpa [#allocation4], 1

</llo_original>
